<compile_context>
chip_gen: v7x
topology: tpu7x:2x2x1
jax: 0.10.0
libtpu: 0.0.40
codegen_flags: <defaults>
</compile_context>

<pallas_src>
import functools

import jax
import jax.numpy as jnp
from jax.experimental import pallas as pl
from jax.experimental.pallas import tpu as pltpu

BN_EPS = 1e-5
PAD_BIAS = -1e9  # pad-lane bias for the padded softmax columns


def network_kernel(x_ref, w1_ref, b1_ref, bn_ref, w2c_ref, b2c_ref,
                   w2i_ref, b2i_ref, out_c_ref, out_i_ref):
    """One grid step == one branch (0: text, 1: image)."""
    D = x_ref.shape[-1]

    x = x_ref[0]                                            # (B, D) bf16

    # Fused layer-1 (cluster | instance): one (B, D) @ (D, 2D) MXU push,
    # f32 accumulation, f32 bias add.
    h = jnp.dot(x, w1_ref[0], preferred_element_type=jnp.float32) + b1_ref[0]
    h_c = h[:, :D]                                          # cluster hidden
    h_i = h[:, D:]                                          # instance hidden

    # --- cluster head: BatchNorm1d (training-mode batch stats) + ReLU ---
    gb = bn_ref[0]                                          # (2, D): [gamma; beta]
    gamma = gb[0:1, :]
    beta = gb[1:2, :]
    mean = jnp.mean(h_c, axis=0, keepdims=True)
    var = jnp.mean(jnp.square(h_c - mean), axis=0, keepdims=True)
    scale = gamma * jax.lax.rsqrt(var + BN_EPS)
    h_c = (h_c - mean) * scale + beta
    h_c = jnp.maximum(h_c, 0.0).astype(jnp.bfloat16)

    # Layer-2 + softmax over lane-dense padded logits (pad biases = -1e9, so
    # exp(pad) underflows to exactly 0 and pads never touch the denominator).
    logits = (jnp.dot(h_c, w2c_ref[0], preferred_element_type=jnp.float32)
              + b2c_ref[0])
    m = jnp.max(logits, axis=1, keepdims=True)
    e = jnp.exp(logits - m)
    denom = jnp.sum(e, axis=1, keepdims=True)
    out_c_ref[0] = e * pl.reciprocal(denom, approx=True)

    # --- instance head: ReLU + layer-2 ---
    h_i = jnp.maximum(h_i, 0.0).astype(jnp.bfloat16)
    out_i_ref[0] = (jnp.dot(h_i, w2i_ref[0], preferred_element_type=jnp.float32)
                    + b2i_ref[0])


def pack_params(p):
    """Pack the per-head parameters into branch-stacked, fused, padded arrays."""
    D = p["ct_w1"].shape[0]
    C = p["ct_w2"].shape[1]
    c_pad = max(128, ((C + 127) // 128) * 128)

    def pad_w2(w):  # (D, C) -> (D, c_pad), zero-pad columns
        return jnp.pad(w, ((0, 0), (0, c_pad - C)))

    def pad_b2(b):  # (1, C) -> (1, c_pad), pad columns get a huge negative bias
        return jnp.pad(b, ((0, 0), (0, c_pad - C)), constant_values=PAD_BIAS)

    packed = {
        # (2, D, 2D) bf16: [cluster_w1 | instance_w1] per branch
        "w1": jnp.stack([
            jnp.concatenate([p["ct_w1"], p["it_w1"]], axis=1),
            jnp.concatenate([p["ci_w1"], p["ii_w1"]], axis=1)],
            axis=0).astype(jnp.bfloat16),
        # (2, 1, 2D) f32
        "b1": jnp.stack([
            jnp.concatenate([p["ct_b1"], p["it_b1"]], axis=1),
            jnp.concatenate([p["ci_b1"], p["ii_b1"]], axis=1)], axis=0),
        # (2, 2, D) f32: rows = [gamma, beta]
        "bn": jnp.stack([
            jnp.concatenate([p["ct_gamma"], p["ct_beta"]], axis=0),
            jnp.concatenate([p["ci_gamma"], p["ci_beta"]], axis=0)], axis=0),
        # (2, D, c_pad) bf16
        "w2c": jnp.stack([pad_w2(p["ct_w2"]), pad_w2(p["ci_w2"])],
                         axis=0).astype(jnp.bfloat16),
        # (2, 1, c_pad) f32
        "b2c": jnp.stack([pad_b2(p["ct_b2"]), pad_b2(p["ci_b2"])], axis=0),
        # (2, D, F) bf16
        "w2i": jnp.stack([p["it_w2"], p["ii_w2"]], axis=0).astype(jnp.bfloat16),
        # (2, 1, F) f32
        "b2i": jnp.stack([p["it_b2"], p["ii_b2"]], axis=0),
    }
    return packed, C


@functools.partial(jax.jit, static_argnames=("num_clusters",))
def network_forward(text, image, packed, *, num_clusters):
    B, D = text.shape
    c_pad = packed["w2c"].shape[-1]
    F = packed["w2i"].shape[-1]

    x = jnp.stack([text, image], axis=0).astype(jnp.bfloat16)   # (2, B, D)

    grid_spec = pltpu.PrefetchScalarGridSpec(
        num_scalar_prefetch=0,
        grid=(2,),  # branch 0 = text, branch 1 = image
        in_specs=[
            pl.BlockSpec((1, B, D), lambda b: (b, 0, 0)),        # x
            pl.BlockSpec((1, D, 2 * D), lambda b: (b, 0, 0)),    # w1 (fused)
            pl.BlockSpec((1, 1, 2 * D), lambda b: (b, 0, 0)),    # b1 (fused)
            pl.BlockSpec((1, 2, D), lambda b: (b, 0, 0)),        # bn gamma/beta
            pl.BlockSpec((1, D, c_pad), lambda b: (b, 0, 0)),    # w2 cluster
            pl.BlockSpec((1, 1, c_pad), lambda b: (b, 0, 0)),    # b2 cluster
            pl.BlockSpec((1, D, F), lambda b: (b, 0, 0)),        # w2 instance
            pl.BlockSpec((1, 1, F), lambda b: (b, 0, 0)),        # b2 instance
        ],
        out_specs=(
            pl.BlockSpec((1, B, c_pad), lambda b: (b, 0, 0)),    # cluster probs
            pl.BlockSpec((1, B, F), lambda b: (b, 0, 0)),        # instance feats
        ),
    )

    out_c, out_i = pl.pallas_call(
        network_kernel,
        out_shape=(jax.ShapeDtypeStruct((2, B, c_pad), jnp.float32),
                   jax.ShapeDtypeStruct((2, B, F), jnp.float32)),
        grid_spec=grid_spec,
        compiler_params=pltpu.CompilerParams(
            dimension_semantics=("parallel",)),
    )(x, packed["w1"], packed["b1"], packed["bn"], packed["w2c"],
      packed["b2c"], packed["w2i"], packed["b2i"])

    logit_text = out_c[0, :, :num_clusters]
    logit_image = out_c[1, :, :num_clusters]
    logit_text_ins = out_i[0]
    logit_image_ins = out_i[1]
    return logit_text, logit_image, logit_text_ins, logit_image_ins


def init_params(key, in_dim, feature_dim, num_clusters):
    """Deterministic synthetic init (weights stored transposed, [in, out])."""
    keys = jax.random.split(key, 8)

    def tn(k, shape, std=0.02):
        return (jax.random.truncated_normal(k, -2.0, 2.0, shape, jnp.float32)
                * std)

    def uni(k, shape, fan_in):
        bound = 1.0 / jnp.sqrt(fan_in)
        return jax.random.uniform(k, shape, jnp.float32, -bound, bound)

    D, F, C = in_dim, feature_dim, num_clusters
    return {
        # cluster_head_text
        "ct_w1": tn(keys[0], (D, D)),
        "ct_b1": jnp.zeros((1, D), jnp.float32),
        "ct_gamma": jnp.ones((1, D), jnp.float32),
        "ct_beta": jnp.zeros((1, D), jnp.float32),
        "ct_w2": tn(keys[1], (D, C)),
        "ct_b2": jnp.zeros((1, C), jnp.float32),
        # cluster_head_image
        "ci_w1": tn(keys[2], (D, D)),
        "ci_b1": jnp.zeros((1, D), jnp.float32),
        "ci_gamma": jnp.ones((1, D), jnp.float32),
        "ci_beta": jnp.zeros((1, D), jnp.float32),
        "ci_w2": tn(keys[3], (D, C)),
        "ci_b2": jnp.zeros((1, C), jnp.float32),
        # instance_head_text
        "it_w1": uni(keys[4], (D, D), D),
        "it_b1": jnp.zeros((1, D), jnp.float32),
        "it_w2": uni(keys[5], (D, F), D),
        "it_b2": jnp.zeros((1, F), jnp.float32),
        # instance_head_image
        "ii_w1": uni(keys[6], (D, D), D),
        "ii_b1": jnp.zeros((1, D), jnp.float32),
        "ii_w2": uni(keys[7], (D, F), D),
        "ii_b2": jnp.zeros((1, F), jnp.float32),
    }


def reference_forward(text, image, p):
    """Pure-JAX f32 reference of the PyTorch module forward (training-mode BN)."""
    def cluster(x, w1, b1, g, be, w2, b2):
        h = x @ w1 + b1
        mean = h.mean(axis=0, keepdims=True)
        var = ((h - mean) ** 2).mean(axis=0, keepdims=True)
        h = (h - mean) / jnp.sqrt(var + BN_EPS) * g + be
        h = jnp.maximum(h, 0.0)
        return jax.nn.softmax(h @ w2 + b2, axis=1)

    def instance(x, w1, b1, w2, b2):
        h = jnp.maximum(x @ w1 + b1, 0.0)
        return h @ w2 + b2

    return (cluster(text, p["ct_w1"], p["ct_b1"], p["ct_gamma"], p["ct_beta"],
                    p["ct_w2"], p["ct_b2"]),
            cluster(image, p["ci_w1"], p["ci_b1"], p["ci_gamma"], p["ci_beta"],
                    p["ci_w2"], p["ci_b2"]),
            instance(text, p["it_w1"], p["it_b1"], p["it_w2"], p["it_b2"]),
            instance(image, p["ii_w1"], p["ii_b1"], p["ii_w2"], p["ii_b2"]))


if __name__ == "__main__":
    # Small shapes consistent with the module: batch=8, in_dim=128,
    # feature_dim=256, num_clusters=10.
    B, IN_DIM, FEAT_DIM, NUM_CLUSTERS = 8, 128, 256, 10

    key = jax.random.PRNGKey(0)
    k_text, k_image, k_params = jax.random.split(key, 3)

    text = jax.random.normal(k_text, (B, IN_DIM), jnp.float32)
    image = jax.random.normal(k_image, (B, IN_DIM), jnp.float32)
    params = init_params(k_params, IN_DIM, FEAT_DIM, NUM_CLUSTERS)
    packed, C = pack_params(params)

    outs = network_forward(text, image, packed, num_clusters=C)
    jax.block_until_ready(outs)
    logit_text, logit_image, logit_text_ins, logit_image_ins = outs

    # Shapes.
    assert logit_text.shape == (B, NUM_CLUSTERS)
    assert logit_image.shape == (B, NUM_CLUSTERS)
    assert logit_text_ins.shape == (B, FEAT_DIM)
    assert logit_image_ins.shape == (B, FEAT_DIM)

    # Softmax rows sum to ~1 (approx reciprocal -> loose tolerance).
    assert jnp.allclose(jnp.sum(logit_text, axis=1), 1.0, atol=5e-3)
    assert jnp.allclose(jnp.sum(logit_image, axis=1), 1.0, atol=5e-3)

    # Compare against the pure-JAX f32 reference (bf16 matmuls -> loose tol).
    ref = reference_forward(text, image, params)
    for got, want in zip(outs, ref):
        assert jnp.allclose(got, want, atol=5e-2, rtol=5e-2)

    print("KERNEL_OK")
</pallas_src>

<mosaic_0001>
module attributes {stable_mosaic.version = 11 : i64} {
  func.func @network_kernel(%arg0: i32, %arg1: memref<1x8x128xbf16, #tpu.memory_space<vmem>>, %arg2: memref<1x128x256xbf16, #tpu.memory_space<vmem>>, %arg3: memref<1x1x256xf32, #tpu.memory_space<vmem>>, %arg4: memref<1x2x128xf32, #tpu.memory_space<vmem>>, %arg5: memref<1x128x128xbf16, #tpu.memory_space<vmem>>, %arg6: memref<1x1x128xf32, #tpu.memory_space<vmem>>, %arg7: memref<1x128x256xbf16, #tpu.memory_space<vmem>>, %arg8: memref<1x1x256xf32, #tpu.memory_space<vmem>>, %arg9: memref<1x8x128xf32, #tpu.memory_space<vmem>>, %arg10: memref<1x8x256xf32, #tpu.memory_space<vmem>>) attributes {dimension_semantics = [#tpu.dimension_semantics<parallel>], iteration_bounds = array<i64: 2>, scalar_prefetch = 0 : i64, scratch_operands = 0 : i64, tpu.core_type = #tpu.core_type<tc>, window_params = [{transform_indices = @transform_0, window_bounds = array<i64: 1, 8, 128>}, {transform_indices = @transform_1, window_bounds = array<i64: 1, 128, 256>}, {transform_indices = @transform_2, window_bounds = array<i64: 1, 1, 256>}, {transform_indices = @transform_3, window_bounds = array<i64: 1, 2, 128>}, {transform_indices = @transform_4, window_bounds = array<i64: 1, 128, 128>}, {transform_indices = @transform_5, window_bounds = array<i64: 1, 1, 128>}, {transform_indices = @transform_6, window_bounds = array<i64: 1, 128, 256>}, {transform_indices = @transform_7, window_bounds = array<i64: 1, 1, 256>}, {transform_indices = @transform_8, window_bounds = array<i64: 1, 8, 128>}, {transform_indices = @transform_9, window_bounds = array<i64: 1, 8, 256>}]} {
    %c0 = arith.constant 0 : index
    %c0_0 = arith.constant 0 : index
    %c0_1 = arith.constant 0 : index
    %0 = vector.load %arg1[%c0, %c0_0, %c0_1] : memref<1x8x128xbf16, #tpu.memory_space<vmem>>, vector<1x8x128xbf16>
    %1 = vector.shape_cast %0 : vector<1x8x128xbf16> to vector<8x128xbf16>
    %c0_2 = arith.constant 0 : index
    %c0_3 = arith.constant 0 : index
    %c0_4 = arith.constant 0 : index
    %2 = vector.load %arg2[%c0_2, %c0_3, %c0_4] : memref<1x128x256xbf16, #tpu.memory_space<vmem>>, vector<1x128x256xbf16>
    %3 = vector.shape_cast %2 : vector<1x128x256xbf16> to vector<128x256xbf16>
    %cst = arith.constant dense<0.000000e+00> : vector<8x256xf32>
    %4 = tpu.matmul %1, %3, %cst {dimension_numbers = #tpu.dot_dimension_numbers<[1], [0], [0], [1], [0, 0, 1, 1], [], []>} : vector<8x128xbf16>, vector<128x256xbf16>, vector<8x256xf32> -> vector<8x256xf32>
    %c0_5 = arith.constant 0 : index
    %c0_6 = arith.constant 0 : index
    %c0_7 = arith.constant 0 : index
    %5 = vector.load %arg3[%c0_5, %c0_6, %c0_7] : memref<1x1x256xf32, #tpu.memory_space<vmem>>, vector<1x1x256xf32>
    %6 = vector.shape_cast %5 : vector<1x1x256xf32> to vector<1x256xf32>
    %7 = vector.broadcast %6 : vector<1x256xf32> to vector<8x256xf32>
    %8 = arith.addf %4, %7 : vector<8x256xf32>
    %9 = vector.extract_strided_slice %8 {offsets = [0, 0], sizes = [8, 128], strides = [1, 1]} : vector<8x256xf32> to vector<8x128xf32>
    %10 = vector.extract_strided_slice %8 {offsets = [0, 128], sizes = [8, 128], strides = [1, 1]} : vector<8x256xf32> to vector<8x128xf32>
    %c0_8 = arith.constant 0 : index
    %c0_9 = arith.constant 0 : index
    %c0_10 = arith.constant 0 : index
    %11 = vector.load %arg4[%c0_8, %c0_9, %c0_10] : memref<1x2x128xf32, #tpu.memory_space<vmem>>, vector<1x2x128xf32>
    %12 = vector.shape_cast %11 : vector<1x2x128xf32> to vector<2x128xf32>
    %13 = vector.extract_strided_slice %12 {offsets = [0, 0], sizes = [1, 128], strides = [1, 1]} : vector<2x128xf32> to vector<1x128xf32>
    %14 = vector.extract_strided_slice %12 {offsets = [1, 0], sizes = [1, 128], strides = [1, 1]} : vector<2x128xf32> to vector<1x128xf32>
    %cst_11 = arith.constant dense<0.000000e+00> : vector<128xf32>
    %15 = vector.multi_reduction <add>, %9, %cst_11 [0] : vector<8x128xf32> to vector<128xf32>
    %16 = vector.shape_cast %15 : vector<128xf32> to vector<1x128xf32>
    %cst_12 = arith.constant 8.000000e+00 : f32
    %17 = vector.broadcast %cst_12 : f32 to vector<1x128xf32>
    %18 = arith.divf %16, %17 : vector<1x128xf32>
    %19 = vector.broadcast %18 : vector<1x128xf32> to vector<8x128xf32>
    %20 = arith.subf %9, %19 : vector<8x128xf32>
    %21 = arith.mulf %20, %20 : vector<8x128xf32>
    %cst_13 = arith.constant dense<0.000000e+00> : vector<128xf32>
    %22 = vector.multi_reduction <add>, %21, %cst_13 [0] : vector<8x128xf32> to vector<128xf32>
    %23 = vector.shape_cast %22 : vector<128xf32> to vector<1x128xf32>
    %cst_14 = arith.constant 8.000000e+00 : f32
    %24 = vector.broadcast %cst_14 : f32 to vector<1x128xf32>
    %25 = arith.divf %23, %24 : vector<1x128xf32>
    %cst_15 = arith.constant 9.99999974E-6 : f32
    %26 = vector.broadcast %cst_15 : f32 to vector<1x128xf32>
    %27 = arith.addf %25, %26 : vector<1x128xf32>
    %28 = math.rsqrt %27 : vector<1x128xf32>
    %29 = arith.mulf %13, %28 : vector<1x128xf32>
    %30 = vector.broadcast %18 : vector<1x128xf32> to vector<8x128xf32>
    %31 = arith.subf %9, %30 : vector<8x128xf32>
    %32 = vector.broadcast %29 : vector<1x128xf32> to vector<8x128xf32>
    %33 = arith.mulf %31, %32 : vector<8x128xf32>
    %34 = vector.broadcast %14 : vector<1x128xf32> to vector<8x128xf32>
    %35 = arith.addf %33, %34 : vector<8x128xf32>
    %cst_16 = arith.constant 0.000000e+00 : f32
    %36 = vector.broadcast %cst_16 : f32 to vector<8x128xf32>
    %37 = arith.maximumf %35, %36 : vector<8x128xf32>
    %38 = arith.truncf %37 : vector<8x128xf32> to vector<8x128xbf16>
    %c0_17 = arith.constant 0 : index
    %c0_18 = arith.constant 0 : index
    %c0_19 = arith.constant 0 : index
    %39 = vector.load %arg5[%c0_17, %c0_18, %c0_19] : memref<1x128x128xbf16, #tpu.memory_space<vmem>>, vector<1x128x128xbf16>
    %40 = vector.shape_cast %39 : vector<1x128x128xbf16> to vector<128x128xbf16>
    %cst_20 = arith.constant dense<0.000000e+00> : vector<8x128xf32>
    %41 = tpu.matmul %38, %40, %cst_20 {dimension_numbers = #tpu.dot_dimension_numbers<[1], [0], [0], [1], [0, 0, 1, 1], [], []>} : vector<8x128xbf16>, vector<128x128xbf16>, vector<8x128xf32> -> vector<8x128xf32>
    %c0_21 = arith.constant 0 : index
    %c0_22 = arith.constant 0 : index
    %c0_23 = arith.constant 0 : index
    %42 = vector.load %arg6[%c0_21, %c0_22, %c0_23] : memref<1x1x128xf32, #tpu.memory_space<vmem>>, vector<1x1x128xf32>
    %43 = vector.shape_cast %42 : vector<1x1x128xf32> to vector<1x128xf32>
    %44 = vector.broadcast %43 : vector<1x128xf32> to vector<8x128xf32>
    %45 = arith.addf %41, %44 : vector<8x128xf32>
    %cst_24 = arith.constant dense<0xFF800000> : vector<8xf32>
    %46 = vector.multi_reduction <maximumf>, %45, %cst_24 [1] : vector<8x128xf32> to vector<8xf32>
    %47 = vector.shape_cast %46 : vector<8xf32> to vector<8x1xf32>
    %48 = vector.broadcast %47 : vector<8x1xf32> to vector<8x128xf32>
    %49 = arith.subf %45, %48 : vector<8x128xf32>
    %50 = math.exp %49 : vector<8x128xf32>
    %cst_25 = arith.constant dense<0.000000e+00> : vector<8xf32>
    %51 = vector.multi_reduction <add>, %50, %cst_25 [1] : vector<8x128xf32> to vector<8xf32>
    %52 = vector.shape_cast %51 : vector<8xf32> to vector<8x1xf32>
    %53 = tpu.reciprocal %52 {approx = true} : vector<8x1xf32> -> vector<8x1xf32>
    %54 = vector.broadcast %53 : vector<8x1xf32> to vector<8x128xf32>
    %55 = arith.mulf %50, %54 : vector<8x128xf32>
    %c0_26 = arith.constant 0 : index
    %c0_27 = arith.constant 0 : index
    %c0_28 = arith.constant 0 : index
    %56 = vector.load %arg9[%c0_26, %c0_27, %c0_28] : memref<1x8x128xf32, #tpu.memory_space<vmem>>, vector<1x8x128xf32>
    %57 = vector.shape_cast %56 : vector<1x8x128xf32> to vector<8x128xf32>
    %58 = vector.shape_cast %55 : vector<8x128xf32> to vector<1x8x128xf32>
    tpu.vector_store %arg9[%c0_26, %c0_27, %c0_28], %58 {strides = array<i32>} : memref<1x8x128xf32, #tpu.memory_space<vmem>>, vector<1x8x128xf32>,
    %cst_29 = arith.constant 0.000000e+00 : f32
    %59 = vector.broadcast %cst_29 : f32 to vector<8x128xf32>
    %60 = arith.maximumf %10, %59 : vector<8x128xf32>
    %61 = arith.truncf %60 : vector<8x128xf32> to vector<8x128xbf16>
    %c0_30 = arith.constant 0 : index
    %c0_31 = arith.constant 0 : index
    %c0_32 = arith.constant 0 : index
    %62 = vector.load %arg7[%c0_30, %c0_31, %c0_32] : memref<1x128x256xbf16, #tpu.memory_space<vmem>>, vector<1x128x256xbf16>
    %63 = vector.shape_cast %62 : vector<1x128x256xbf16> to vector<128x256xbf16>
    %cst_33 = arith.constant dense<0.000000e+00> : vector<8x256xf32>
    %64 = tpu.matmul %61, %63, %cst_33 {dimension_numbers = #tpu.dot_dimension_numbers<[1], [0], [0], [1], [0, 0, 1, 1], [], []>} : vector<8x128xbf16>, vector<128x256xbf16>, vector<8x256xf32> -> vector<8x256xf32>
    %c0_34 = arith.constant 0 : index
    %c0_35 = arith.constant 0 : index
    %c0_36 = arith.constant 0 : index
    %65 = vector.load %arg8[%c0_34, %c0_35, %c0_36] : memref<1x1x256xf32, #tpu.memory_space<vmem>>, vector<1x1x256xf32>
    %66 = vector.shape_cast %65 : vector<1x1x256xf32> to vector<1x256xf32>
    %67 = vector.broadcast %66 : vector<1x256xf32> to vector<8x256xf32>
    %68 = arith.addf %64, %67 : vector<8x256xf32>
    %c0_37 = arith.constant 0 : index
    %c0_38 = arith.constant 0 : index
    %c0_39 = arith.constant 0 : index
    %69 = vector.load %arg10[%c0_37, %c0_38, %c0_39] : memref<1x8x256xf32, #tpu.memory_space<vmem>>, vector<1x8x256xf32>
    %70 = vector.shape_cast %69 : vector<1x8x256xf32> to vector<8x256xf32>
    %71 = vector.shape_cast %68 : vector<8x256xf32> to vector<1x8x256xf32>
    tpu.vector_store %arg10[%c0_37, %c0_38, %c0_39], %71 {strides = array<i32>} : memref<1x8x256xf32, #tpu.memory_space<vmem>>, vector<1x8x256xf32>,
    return
  }
  func.func @transform_0(%arg0: i32) -> (i32, i32, i32) {
    %c0_i32 = arith.constant 0 : i32
    %c0_i32_0 = arith.constant 0 : i32
    %c0_i32_1 = arith.constant 0 : i32
    return %arg0, %c0_i32, %c0_i32_0 : i32, i32, i32
  }
  func.func @transform_1(%arg0: i32) -> (i32, i32, i32) {
    %c0_i32 = arith.constant 0 : i32
    %c0_i32_0 = arith.constant 0 : i32
    %c0_i32_1 = arith.constant 0 : i32
    return %arg0, %c0_i32, %c0_i32_0 : i32, i32, i32
  }
  func.func @transform_2(%arg0: i32) -> (i32, i32, i32) {
    %c0_i32 = arith.constant 0 : i32
    %c0_i32_0 = arith.constant 0 : i32
    %c0_i32_1 = arith.constant 0 : i32
    return %arg0, %c0_i32, %c0_i32_0 : i32, i32, i32
  }
  func.func @transform_3(%arg0: i32) -> (i32, i32, i32) {
    %c0_i32 = arith.constant 0 : i32
    %c0_i32_0 = arith.constant 0 : i32
    %c0_i32_1 = arith.constant 0 : i32
    return %arg0, %c0_i32, %c0_i32_0 : i32, i32, i32
  }
  func.func @transform_4(%arg0: i32) -> (i32, i32, i32) {
    %c0_i32 = arith.constant 0 : i32
    %c0_i32_0 = arith.constant 0 : i32
    %c0_i32_1 = arith.constant 0 : i32
    return %arg0, %c0_i32, %c0_i32_0 : i32, i32, i32
  }
  func.func @transform_5(%arg0: i32) -> (i32, i32, i32) {
    %c0_i32 = arith.constant 0 : i32
    %c0_i32_0 = arith.constant 0 : i32
    %c0_i32_1 = arith.constant 0 : i32
    return %arg0, %c0_i32, %c0_i32_0 : i32, i32, i32
  }
  func.func @transform_6(%arg0: i32) -> (i32, i32, i32) {
    %c0_i32 = arith.constant 0 : i32
    %c0_i32_0 = arith.constant 0 : i32
    %c0_i32_1 = arith.constant 0 : i32
    return %arg0, %c0_i32, %c0_i32_0 : i32, i32, i32
  }
  func.func @transform_7(%arg0: i32) -> (i32, i32, i32) {
    %c0_i32 = arith.constant 0 : i32
    %c0_i32_0 = arith.constant 0 : i32
    %c0_i32_1 = arith.constant 0 : i32
    return %arg0, %c0_i32, %c0_i32_0 : i32, i32, i32
  }
  func.func @transform_8(%arg0: i32) -> (i32, i32, i32) {
    %c0_i32 = arith.constant 0 : i32
    %c0_i32_0 = arith.constant 0 : i32
    %c0_i32_1 = arith.constant 0 : i32
    return %arg0, %c0_i32, %c0_i32_0 : i32, i32, i32
  }
  func.func @transform_9(%arg0: i32) -> (i32, i32, i32) {
    %c0_i32 = arith.constant 0 : i32
    %c0_i32_0 = arith.constant 0 : i32
    %c0_i32_1 = arith.constant 0 : i32
    return %arg0, %c0_i32, %c0_i32_0 : i32, i32, i32
  }
}

</mosaic_0001>

<llo_original>
// kernel: network_forward.1
$region0: #{network_forward.1}
  #allocation0 [shape = 'u32[]', space=smem, size = 0x4, offset = 0x4, fixed_abs, tag = 'smem constant byte address 0x4 - core index']
  #allocation1 [shape = 'u32[144,128]{1,0:T(1,128)}', space=vmem, size = 0x12000, scoped, tag = 'internal scratch']
  %s0 = inlined_call_operand.vmem [shape: bf16[2,8,128], index: 0, kind: input, shape index: {}]
  %s1 = inlined_call_operand.hbm [shape: bf16[2,128,256], index: 1, kind: input, shape index: {}]
  %s2 = inlined_call_operand.vmem [shape: f32[2,1,256], index: 2, kind: input, shape index: {}]
  %s3 = inlined_call_operand.vmem [shape: f32[2,2,128], index: 3, kind: input, shape index: {}]
  %s4 = inlined_call_operand.hbm [shape: bf16[2,128,128], index: 4, kind: input, shape index: {}]
  %s5 = inlined_call_operand.vmem [shape: f32[2,1,128], index: 5, kind: input, shape index: {}]
  %s6 = inlined_call_operand.hbm [shape: bf16[2,128,256], index: 6, kind: input, shape index: {}]
  %s7 = inlined_call_operand.vmem [shape: f32[2,1,256], index: 7, kind: input, shape index: {}]
  %s8 = inlined_call_operand.vmem [shape: f32[2,8,128], index: 8, kind: output, shape index: {0}]
  %s9 = inlined_call_operand.vmem [shape: f32[2,8,256], index: 9, kind: output, shape index: {1}]
  %10 = xla_tuple %s8, %s9
  %s11 = sld [smem:[#allocation0]]
  $region85: #{network_forward.1} parent=0
    _
  %s13 = ssub.s32 1, %s11
  %s14 = scalar_select 0, %s13, %s11
  $region1: #{network_forward.1} parent=0
    #allocation2 [shape = 'u8[131072]{0}', space=vmem, size = 0x20000, scoped, tag = 'input window, operand 1']
    #allocation3 [shape = 's32[2]{0}', space=sflag, size = 0x8, scoped, tag = 'scoped memory for network_forward.1']
    #allocation4 [shape = 'u8[65536]{0}', space=vmem, size = 0x10000, scoped, tag = 'input window, operand 4']
    #allocation5 [shape = 's32[2]{0}', space=sflag, size = 0x8, scoped, tag = 'scoped memory for network_forward.1']
    #allocation6 [shape = 'u8[131072]{0}', space=vmem, size = 0x20000, scoped, tag = 'input window, operand 6']
    %15 = vsyncpa [#allocation3], 0
    %s16 = scalar_lea.sflag [#allocation3], 1
    %17 = vsyncpa %s16, 0
    %18 = vsyncpa [#allocation5], 0
    %s19 = scalar_lea.sflag [#allocation5], 1
    %20 = vsyncpa %s19, 0
    loop: start=0, step=1, limit=4
    $region2: #{network_forward.1} parent=1 // loop_pre_header
      _
    $region3: #{network_forward.1} parent=1 // loop_header
      %s22 = sphi 0, %s26
      %p23 = scmp.ge.s32.totalorder %s22, 4
      %s32 = sphi 0, %s34
      %s35 = sphi 0, %s32
      %s36 = sphi 0, %s35
      %s52 = sphi 0, %s36
      %s58 = sphi 0, %s60
      %s61 = sphi 0, %s58
      %s62 = sphi 0, %s61
      %s78 = sphi 0, %s62
      %s84 = sphi 0, %s86
      %s87 = sphi 0, %s84
      %s88 = sphi 0, %s87
      %s104 = sphi 0, %s88
      %s110 = sphi 0, %s112
      %s113 = sphi 0, %s110
      %s114 = sphi 0, %s113
      %s130 = sphi 0, %s114
      %s136 = sphi 0, %s138
      %s139 = sphi 0, %s136
      %s140 = sphi 0, %s139
      %s156 = sphi 0, %s140
      %s162 = sphi 0, %s164
      %s165 = sphi 0, %s162
      %s166 = sphi 0, %s165
      %s182 = sphi 0, %s166
      %s188 = sphi 0, %s190
      %s191 = sphi 0, %s188
      %s192 = sphi 0, %s191
      %s208 = sphi 0, %s192
      %s214 = sphi 0, %s216
      %s217 = sphi 0, %s214
      %s218 = sphi 0, %s217
      %s234 = sphi 0, %s218
      %s240 = sphi 0, %s242
      %s243 = sphi 0, %s240
      %s244 = sphi 0, %s243
      %s260 = sphi 0, %s244
      %s266 = sphi 0, %s268
      %s269 = sphi 0, %s266
      %s270 = sphi 0, %s269
      %s286 = sphi 0, %s270
    $region4: #{network_forward.1} parent=1 // loop_header_branch
      %25 = sbr.rel (%p23) target = $region8
    $region5: #{network_forward.1} parent=1 // loop_body
      %s27 = ssub.s32 %s22, 1
      %s28 = ssub.s32 %s22, 2
      %s29 = sadd.s32 %s22, 1
      %s30 = ssub.s32 %s22, %s29
      %p31 = scmp.eq.s32.totalorder %s30, 0
      %s33 = sadd.s32 %s32, 1
      %s34 = scalar_select %p31, %s32, %s33
      %p37 = pneg %p31
      %p38 = scmp.eq.s32.totalorder %s22, 1
      %p39 = por %p37, %p38
      %p40 = scmp.ne.s32.totalorder %s32, %s35
      %p41 = scmp.eq.s32.totalorder %s22, 0
      %p42 = por %p40, %p41
      %p43 = scmp.ne.s32.totalorder %s32, %s35
      %p44 = scmp.eq.s32.totalorder %s27, 1
      %p45 = por %p43, %p44
      %p46 = scmp.ne.s32.totalorder %s35, %s36
      %p47 = scmp.eq.s32.totalorder %s27, 0
      %p48 = por %p46, %p47
      %p49 = scmp.ne.s32.totalorder %s35, %s36
      %p50 = scmp.eq.s32.totalorder %s28, 1
      %p51 = por %p49, %p50
      %p53 = scmp.ne.s32.totalorder %s36, %s52
      %p54 = scmp.eq.s32.totalorder %s28, 0
      %p55 = por %p53, %p54
      %s56 = ssub.s32 %s22, %s29
      %p57 = scmp.eq.s32.totalorder %s56, 0
      %s59 = sadd.s32 %s58, 1
      %s60 = scalar_select %p57, %s58, %s59
      %p63 = pneg %p57
      %p64 = scmp.eq.s32.totalorder %s22, 1
      %p65 = por %p63, %p64
      %p66 = scmp.ne.s32.totalorder %s58, %s61
      %p67 = scmp.eq.s32.totalorder %s22, 0
      %p68 = por %p66, %p67
      %p69 = scmp.ne.s32.totalorder %s58, %s61
      %p70 = scmp.eq.s32.totalorder %s27, 1
      %p71 = por %p69, %p70
      %p72 = scmp.ne.s32.totalorder %s61, %s62
      %p73 = scmp.eq.s32.totalorder %s27, 0
      %p74 = por %p72, %p73
      %p75 = scmp.ne.s32.totalorder %s61, %s62
      %p76 = scmp.eq.s32.totalorder %s28, 1
      %p77 = por %p75, %p76
      %p79 = scmp.ne.s32.totalorder %s62, %s78
      %p80 = scmp.eq.s32.totalorder %s28, 0
      %p81 = por %p79, %p80
      %s82 = ssub.s32 %s22, %s29
      %p83 = scmp.eq.s32.totalorder %s82, 0
      %s85 = sadd.s32 %s84, 1
      %s86 = scalar_select %p83, %s84, %s85
      %p89 = pneg %p83
      %p90 = scmp.eq.s32.totalorder %s22, 1
      %p91 = por %p89, %p90
      %p92 = scmp.ne.s32.totalorder %s84, %s87
      %p93 = scmp.eq.s32.totalorder %s22, 0
      %p94 = por %p92, %p93
      %p95 = scmp.ne.s32.totalorder %s84, %s87
      %p96 = scmp.eq.s32.totalorder %s27, 1
      %p97 = por %p95, %p96
      %p98 = scmp.ne.s32.totalorder %s87, %s88
      %p99 = scmp.eq.s32.totalorder %s27, 0
      %p100 = por %p98, %p99
      %p101 = scmp.ne.s32.totalorder %s87, %s88
      %p102 = scmp.eq.s32.totalorder %s28, 1
      %p103 = por %p101, %p102
      %p105 = scmp.ne.s32.totalorder %s88, %s104
      %p106 = scmp.eq.s32.totalorder %s28, 0
      %p107 = por %p105, %p106
      %s108 = ssub.s32 %s22, %s29
      %p109 = scmp.eq.s32.totalorder %s108, 0
      %s111 = sadd.s32 %s110, 1
      %s112 = scalar_select %p109, %s110, %s111
      %p115 = pneg %p109
      %p116 = scmp.eq.s32.totalorder %s22, 1
      %p117 = por %p115, %p116
      %p118 = scmp.ne.s32.totalorder %s110, %s113
      %p119 = scmp.eq.s32.totalorder %s22, 0
      %p120 = por %p118, %p119
      %p121 = scmp.ne.s32.totalorder %s110, %s113
      %p122 = scmp.eq.s32.totalorder %s27, 1
      %p123 = por %p121, %p122
      %p124 = scmp.ne.s32.totalorder %s113, %s114
      %p125 = scmp.eq.s32.totalorder %s27, 0
      %p126 = por %p124, %p125
      %p127 = scmp.ne.s32.totalorder %s113, %s114
      %p128 = scmp.eq.s32.totalorder %s28, 1
      %p129 = por %p127, %p128
      %p131 = scmp.ne.s32.totalorder %s114, %s130
      %p132 = scmp.eq.s32.totalorder %s28, 0
      %p133 = por %p131, %p132
      %s134 = ssub.s32 %s22, %s29
      %p135 = scmp.eq.s32.totalorder %s134, 0
      %s137 = sadd.s32 %s136, 1
      %s138 = scalar_select %p135, %s136, %s137
      %p141 = pneg %p135
      %p142 = scmp.eq.s32.totalorder %s22, 1
      %p143 = por %p141, %p142
      %p144 = scmp.ne.s32.totalorder %s136, %s139
      %p145 = scmp.eq.s32.totalorder %s22, 0
      %p146 = por %p144, %p145
      %p147 = scmp.ne.s32.totalorder %s136, %s139
      %p148 = scmp.eq.s32.totalorder %s27, 1
      %p149 = por %p147, %p148
      %p150 = scmp.ne.s32.totalorder %s139, %s140
      %p151 = scmp.eq.s32.totalorder %s27, 0
      %p152 = por %p150, %p151
      %p153 = scmp.ne.s32.totalorder %s139, %s140
      %p154 = scmp.eq.s32.totalorder %s28, 1
      %p155 = por %p153, %p154
      %p157 = scmp.ne.s32.totalorder %s140, %s156
      %p158 = scmp.eq.s32.totalorder %s28, 0
      %p159 = por %p157, %p158
      %s160 = ssub.s32 %s22, %s29
      %p161 = scmp.eq.s32.totalorder %s160, 0
      %s163 = sadd.s32 %s162, 1
      %s164 = scalar_select %p161, %s162, %s163
      %p167 = pneg %p161
      %p168 = scmp.eq.s32.totalorder %s22, 1
      %p169 = por %p167, %p168
      %p170 = scmp.ne.s32.totalorder %s162, %s165
      %p171 = scmp.eq.s32.totalorder %s22, 0
      %p172 = por %p170, %p171
      %p173 = scmp.ne.s32.totalorder %s162, %s165
      %p174 = scmp.eq.s32.totalorder %s27, 1
      %p175 = por %p173, %p174
      %p176 = scmp.ne.s32.totalorder %s165, %s166
      %p177 = scmp.eq.s32.totalorder %s27, 0
      %p178 = por %p176, %p177
      %p179 = scmp.ne.s32.totalorder %s165, %s166
      %p180 = scmp.eq.s32.totalorder %s28, 1
      %p181 = por %p179, %p180
      %p183 = scmp.ne.s32.totalorder %s166, %s182
      %p184 = scmp.eq.s32.totalorder %s28, 0
      %p185 = por %p183, %p184
      %s186 = ssub.s32 %s22, %s29
      %p187 = scmp.eq.s32.totalorder %s186, 0
      %s189 = sadd.s32 %s188, 1
      %s190 = scalar_select %p187, %s188, %s189
      %p193 = pneg %p187
      %p194 = scmp.eq.s32.totalorder %s22, 1
      %p195 = por %p193, %p194
      %p196 = scmp.ne.s32.totalorder %s188, %s191
      %p197 = scmp.eq.s32.totalorder %s22, 0
      %p198 = por %p196, %p197
      %p199 = scmp.ne.s32.totalorder %s188, %s191
      %p200 = scmp.eq.s32.totalorder %s27, 1
      %p201 = por %p199, %p200
      %p202 = scmp.ne.s32.totalorder %s191, %s192
      %p203 = scmp.eq.s32.totalorder %s27, 0
      %p204 = por %p202, %p203
      %p205 = scmp.ne.s32.totalorder %s191, %s192
      %p206 = scmp.eq.s32.totalorder %s28, 1
      %p207 = por %p205, %p206
      %p209 = scmp.ne.s32.totalorder %s192, %s208
      %p210 = scmp.eq.s32.totalorder %s28, 0
      %p211 = por %p209, %p210
      %s212 = ssub.s32 %s22, %s29
      %p213 = scmp.eq.s32.totalorder %s212, 0
      %s215 = sadd.s32 %s214, 1
      %s216 = scalar_select %p213, %s214, %s215
      %p219 = pneg %p213
      %p220 = scmp.eq.s32.totalorder %s22, 1
      %p221 = por %p219, %p220
      %p222 = scmp.ne.s32.totalorder %s214, %s217
      %p223 = scmp.eq.s32.totalorder %s22, 0
      %p224 = por %p222, %p223
      %p225 = scmp.ne.s32.totalorder %s214, %s217
      %p226 = scmp.eq.s32.totalorder %s27, 1
      %p227 = por %p225, %p226
      %p228 = scmp.ne.s32.totalorder %s217, %s218
      %p229 = scmp.eq.s32.totalorder %s27, 0
      %p230 = por %p228, %p229
      %p231 = scmp.ne.s32.totalorder %s217, %s218
      %p232 = scmp.eq.s32.totalorder %s28, 1
      %p233 = por %p231, %p232
      %p235 = scmp.ne.s32.totalorder %s218, %s234
      %p236 = scmp.eq.s32.totalorder %s28, 0
      %p237 = por %p235, %p236
      %s238 = ssub.s32 %s22, %s29
      %p239 = scmp.eq.s32.totalorder %s238, 0
      %s241 = sadd.s32 %s240, 1
      %s242 = scalar_select %p239, %s240, %s241
      %p245 = pneg %p239
      %p246 = scmp.eq.s32.totalorder %s22, 1
      %p247 = por %p245, %p246
      %p248 = scmp.ne.s32.totalorder %s240, %s243
      %p249 = scmp.eq.s32.totalorder %s22, 0
      %p250 = por %p248, %p249
      %p251 = scmp.ne.s32.totalorder %s240, %s243
      %p252 = scmp.eq.s32.totalorder %s27, 1
      %p253 = por %p251, %p252
      %p254 = scmp.ne.s32.totalorder %s243, %s244
      %p255 = scmp.eq.s32.totalorder %s27, 0
      %p256 = por %p254, %p255
      %p257 = scmp.ne.s32.totalorder %s243, %s244
      %p258 = scmp.eq.s32.totalorder %s28, 1
      %p259 = por %p257, %p258
      %p261 = scmp.ne.s32.totalorder %s244, %s260
      %p262 = scmp.eq.s32.totalorder %s28, 0
      %p263 = por %p261, %p262
      %s264 = ssub.s32 %s22, %s29
      %p265 = scmp.eq.s32.totalorder %s264, 0
      %s267 = sadd.s32 %s266, 1
      %s268 = scalar_select %p265, %s266, %s267
      %p271 = pneg %p265
      %p272 = scmp.eq.s32.totalorder %s22, 1
      %p273 = por %p271, %p272
      %p274 = scmp.ne.s32.totalorder %s266, %s269
      %p275 = scmp.eq.s32.totalorder %s22, 0
      %p276 = por %p274, %p275
      %p277 = scmp.ne.s32.totalorder %s266, %s269
      %p278 = scmp.eq.s32.totalorder %s27, 1
      %p279 = por %p277, %p278
      %p280 = scmp.ne.s32.totalorder %s269, %s270
      %p281 = scmp.eq.s32.totalorder %s27, 0
      %p282 = por %p280, %p281
      %p283 = scmp.ne.s32.totalorder %s269, %s270
      %p284 = scmp.eq.s32.totalorder %s28, 1
      %p285 = por %p283, %p284
      %p287 = scmp.ne.s32.totalorder %s270, %s286
      %p288 = scmp.eq.s32.totalorder %s28, 0
      %p289 = por %p287, %p288
      %p290 = scmp.le.s32.totalorder 1, %s22
      %p291 = scmp.lt.s32.totalorder %s22, 3
      %p292 = pnand %p290, %p291
      %p293 = pneg %p292
      // Predicated region
      $region9: #{network_forward.1} parent=5 // pred_check
        _
      $region10: #{network_forward.1} parent=5 // pred_check_branch
        %295 = sbr.rel (%p292) target = $region12
      $region11: #{network_forward.1} parent=5 // pred_region
        %s296 = ssub.s32 %s22, 1
      $region12: #{network_forward.1} parent=5 // pred_fallthru
        _
      %p297 = scmp.lt.s32.totalorder %s22, 2
      // Predicated region
      $region13: #{network_forward.1} parent=5 // pred_check
        %p298 = pneg %p297
      $region14: #{network_forward.1} parent=5 // pred_check_branch
        %300 = sbr.rel (%p298) target = $region16
      $region15: #{network_forward.1} parent=5 // pred_region
        // Predicated region
        $region17: #{network_forward.1} parent=15 // pred_check
          %p301 = pneg %p42
        $region18: #{network_forward.1} parent=15 // pred_check_branch
          %303 = sbr.rel (%p301) target = $region20
        $region19: #{network_forward.1} parent=15 // pred_region
          %p304 = scmp.lt.s32.totalorder %s22, 1
          %s305 = scalar_select %p304, %s22, 1
          %s306 = smul.addr %s305, 4
          %s307 = scalar_lea.vmem %s0, %s306
        $region20: #{network_forward.1} parent=15 // pred_fallthru
          _
        // Predicated region
        $region21: #{network_forward.1} parent=15 // pred_check
          %p308 = pneg %p68
        $region22: #{network_forward.1} parent=15 // pred_check_branch
          %310 = sbr.rel (%p308) target = $region24
        $region23: #{network_forward.1} parent=15 // pred_region
          %s311 = sand.u32 %s58, 1
          %s312 = scalar_lea.sflag [#allocation3], %s311
          %s313 = sand.u32 %s58, 1
          %s314 = smul.addr %s313, 128
          %s315 = scalar_lea.vmem [#allocation2], %s314
          %s317 = ssub.s32 2048, 2048
          %318 = vsyncadd %s312, %s317
          %s319 = smul.addr %s22, 32
          %s320 = smul.addr %s319, 64
          %s321 = scalar_lea.hbm %s1, %s320
          %s322 = sshll.u32 %s315, 4
          %s323 = int_to_ptr.vmem [resolvable:$true] %s322
          %328 = dma.hbm_to_vmem [thread:$0]  %s321, 2048, %s323, %s312, 128, 128, 8
        $region24: #{network_forward.1} parent=15 // pred_fallthru
          _
        // Predicated region
        $region25: #{network_forward.1} parent=15 // pred_check
          %p329 = pneg %p94
        $region26: #{network_forward.1} parent=15 // pred_check_branch
          %331 = sbr.rel (%p329) target = $region28
        $region27: #{network_forward.1} parent=15 // pred_region
          %p332 = scmp.lt.s32.totalorder %s22, 1
          %s333 = scalar_select %p332, %s22, 1
          %s334 = smul.addr %s333, 2
          %s335 = scalar_lea.vmem %s2, %s334
        $region28: #{network_forward.1} parent=15 // pred_fallthru
          _
        // Predicated region
        $region29: #{network_forward.1} parent=15 // pred_check
          %p336 = pneg %p120
        $region30: #{network_forward.1} parent=15 // pred_check_branch
          %338 = sbr.rel (%p336) target = $region32
        $region31: #{network_forward.1} parent=15 // pred_region
          %p339 = scmp.lt.s32.totalorder %s22, 1
          %s340 = scalar_select %p339, %s22, 1
          %s341 = smul.addr %s340, 2
          %s342 = scalar_lea.vmem %s3, %s341
        $region32: #{network_forward.1} parent=15 // pred_fallthru
          _
        // Predicated region
        $region33: #{network_forward.1} parent=15 // pred_check
          %p343 = pneg %p146
        $region34: #{network_forward.1} parent=15 // pred_check_branch
          %345 = sbr.rel (%p343) target = $region36
        $region35: #{network_forward.1} parent=15 // pred_region
          %s346 = sand.u32 %s22, 1
          %s347 = scalar_lea.sflag [#allocation5], %s346
          %s348 = sand.u32 %s136, 1
          %s349 = smul.addr %s348, 64
          %s350 = scalar_lea.vmem [#allocation4], %s349
          %s352 = ssub.s32 1024, 1024
          %353 = vsyncadd %s347, %s352
          %s354 = smul.addr %s22, 16
          %s355 = smul.addr %s354, 64
          %s356 = scalar_lea.hbm %s4, %s355
          %s357 = sshll.u32 %s350, 4
          %s358 = int_to_ptr.vmem [resolvable:$true] %s357
          %363 = dma.hbm_to_vmem [thread:$0]  %s356, 1024, %s358, %s347, 64, 64, 4
        $region36: #{network_forward.1} parent=15 // pred_fallthru
          _
        // Predicated region
        $region37: #{network_forward.1} parent=15 // pred_check
          %p364 = pneg %p172
        $region38: #{network_forward.1} parent=15 // pred_check_branch
          %366 = sbr.rel (%p364) target = $region40
        $region39: #{network_forward.1} parent=15 // pred_region
          %p367 = scmp.lt.s32.totalorder %s22, 1
          %s368 = scalar_select %p367, %s22, 1
          %s369 = scalar_lea.vmem %s5, %s368
        $region40: #{network_forward.1} parent=15 // pred_fallthru
          _
        // Predicated region
        $region41: #{network_forward.1} parent=15 // pred_check
          %p370 = pneg %p198
        $region42: #{network_forward.1} parent=15 // pred_check_branch
          %372 = sbr.rel (%p370) target = $region44
        $region43: #{network_forward.1} parent=15 // pred_region
          %s373 = sand.u32 %s22, 1
          %s374 = scalar_lea.sflag [#allocation5], %s373
          %s375 = sand.u32 %s188, 1
          %s376 = smul.addr %s375, 128
          %s377 = scalar_lea.vmem [#allocation6], %s376
          %s379 = ssub.s32 2048, 2048
          %380 = vsyncadd %s374, %s379
          %s381 = smul.addr %s22, 32
          %s382 = smul.addr %s381, 64
          %s383 = scalar_lea.hbm %s6, %s382
          %s384 = sshll.u32 %s377, 4
          %s385 = int_to_ptr.vmem [resolvable:$true] %s384
          %390 = dma.hbm_to_vmem [thread:$0]  %s383, 2048, %s385, %s374, 128, 128, 8
        $region44: #{network_forward.1} parent=15 // pred_fallthru
          _
        // Predicated region
        $region45: #{network_forward.1} parent=15 // pred_check
          %p391 = pneg %p224
        $region46: #{network_forward.1} parent=15 // pred_check_branch
          %393 = sbr.rel (%p391) target = $region48
        $region47: #{network_forward.1} parent=15 // pred_region
          %p394 = scmp.lt.s32.totalorder %s22, 1
          %s395 = scalar_select %p394, %s22, 1
          %s396 = smul.addr %s395, 2
          %s397 = scalar_lea.vmem %s7, %s396
        $region48: #{network_forward.1} parent=15 // pred_fallthru
          _
      $region16: #{network_forward.1} parent=5 // pred_fallthru
        _
      %p398 = scmp.le.s32.totalorder 1, %s22
      %p399 = scmp.lt.s32.totalorder %s22, 3
      %p400 = pnand %p398, %p399
      %p401 = pneg %p400
      // Predicated region
      $region49: #{network_forward.1} parent=5 // pred_check
        _
      $region50: #{network_forward.1} parent=5 // pred_check_branch
        %403 = sbr.rel (%p400) target = $region52
      $region51: #{network_forward.1} parent=5 // pred_region
        %s404 = ssub.s32 %s22, 1
        %s405 = sand.u32 %s61, 1
        %s406 = scalar_lea.sflag [#allocation3], %s405
        %s407 = sand.u32 %s61, 1
        %s408 = smul.addr %s407, 128
        %s409 = scalar_lea.vmem [#allocation2], %s408
        // Predicated region
        $region53: #{network_forward.1} parent=51 // pred_check
          %p410 = pneg %p74
        $region54: #{network_forward.1} parent=51 // pred_check_branch
          %412 = sbr.rel (%p410) target = $region56
        $region55: #{network_forward.1} parent=51 // pred_region
          %413 = dma.done %s406, 2048
        $region56: #{network_forward.1} parent=51 // pred_fallthru
          _
        %s414 = sand.u32 %s27, 1
        %s415 = scalar_lea.sflag [#allocation5], %s414
        %s416 = sand.u32 %s139, 1
        %s417 = smul.addr %s416, 64
        %s418 = scalar_lea.vmem [#allocation4], %s417
        // Predicated region
        $region57: #{network_forward.1} parent=51 // pred_check
          %p419 = pneg %p152
        $region58: #{network_forward.1} parent=51 // pred_check_branch
          %421 = sbr.rel (%p419) target = $region60
        $region59: #{network_forward.1} parent=51 // pred_region
          %422 = dma.done %s415, 1024
        $region60: #{network_forward.1} parent=51 // pred_fallthru
          _
        %s423 = sand.u32 %s27, 1
        %s424 = scalar_lea.sflag [#allocation5], %s423
        %s425 = sand.u32 %s191, 1
        %s426 = smul.addr %s425, 128
        %s427 = scalar_lea.vmem [#allocation6], %s426
        // Predicated region
        $region61: #{network_forward.1} parent=51 // pred_check
          %p428 = pneg %p204
        $region62: #{network_forward.1} parent=51 // pred_check_branch
          %430 = sbr.rel (%p428) target = $region64
        $region63: #{network_forward.1} parent=51 // pred_region
          %431 = dma.done %s424, 2048
        $region64: #{network_forward.1} parent=51 // pred_fallthru
          _
        %p432 = scmp.lt.s32.totalorder %s27, 1
        %s433 = scalar_select %p432, %s27, 1
        %s434 = smul.addr %s433, 4
        %s435 = scalar_lea.vmem %s0, %s434
        %p436 = pneg %p48
        %p437 = pneg %p45
        %s438 = sand.u32 %s61, 1
        %s439 = scalar_lea.sflag [#allocation3], %s438
        %s440 = sand.u32 %s61, 1
        %s441 = smul.addr %s440, 128
        %s442 = scalar_lea.vmem [#allocation2], %s441
        %p443 = pneg %p74
        %p444 = pneg %p71
        %p445 = scmp.lt.s32.totalorder %s27, 1
        %s446 = scalar_select %p445, %s27, 1
        %s447 = smul.addr %s446, 2
        %s448 = scalar_lea.vmem %s2, %s447
        %p449 = pneg %p100
        %p450 = pneg %p97
        %p451 = scmp.lt.s32.totalorder %s27, 1
        %s452 = scalar_select %p451, %s27, 1
        %s453 = smul.addr %s452, 2
        %s454 = scalar_lea.vmem %s3, %s453
        %p455 = pneg %p126
        %p456 = pneg %p123
        %s457 = sand.u32 %s27, 1
        %s458 = scalar_lea.sflag [#allocation5], %s457
        %s459 = sand.u32 %s139, 1
        %s460 = smul.addr %s459, 64
        %s461 = scalar_lea.vmem [#allocation4], %s460
        %p462 = pneg %p152
        %p463 = pneg %p149
        %p464 = scmp.lt.s32.totalorder %s27, 1
        %s465 = scalar_select %p464, %s27, 1
        %s466 = scalar_lea.vmem %s5, %s465
        %p467 = pneg %p178
        %p468 = pneg %p175
        %s469 = sand.u32 %s27, 1
        %s470 = scalar_lea.sflag [#allocation5], %s469
        %s471 = sand.u32 %s191, 1
        %s472 = smul.addr %s471, 128
        %s473 = scalar_lea.vmem [#allocation6], %s472
        %p474 = pneg %p204
        %p475 = pneg %p201
        %p476 = scmp.lt.s32.totalorder %s27, 1
        %s477 = scalar_select %p476, %s27, 1
        %s478 = smul.addr %s477, 2
        %s479 = scalar_lea.vmem %s7, %s478
        %p480 = pneg %p230
        %p481 = pneg %p227
        %p482 = pneg %p256
        %p483 = pneg %p253
        %p484 = scmp.lt.s32.totalorder %s27, 1
        %s485 = scalar_select %p484, %s27, 1
        %s486 = smul.addr %s485, 8
        %s487 = scalar_lea.vmem %s8, %s486
        %p488 = pneg %p282
        %p489 = pneg %p279
        %p490 = scmp.lt.s32.totalorder %s27, 1
        %s491 = scalar_select %p490, %s27, 1
        %s492 = smul.addr %s491, 2
        %s493 = smul.addr %s492, 8
        %s494 = scalar_lea.vmem %s9, %s493
        %p495 = scmp.lt.s32.totalorder %s27, 1
        %s496 = scalar_select %p495, %s27, 1
        %s497 = smul.addr %s496, 4
        %s498 = scalar_lea.vmem %s0, %s497
        %p499 = scmp.lt.s32.totalorder %s27, 1
        %s500 = scalar_select %p499, %s27, 1
        %s501 = smul.addr %s500, 2
        %s502 = scalar_lea.vmem %s2, %s501
        %p503 = scmp.lt.s32.totalorder %s27, 1
        %s504 = scalar_select %p503, %s27, 1
        %s505 = smul.addr %s504, 2
        %s506 = scalar_lea.vmem %s3, %s505
        %p507 = scmp.lt.s32.totalorder %s27, 1
        %s508 = scalar_select %p507, %s27, 1
        %s509 = scalar_lea.vmem %s5, %s508
        %p510 = scmp.lt.s32.totalorder %s27, 1
        %s511 = scalar_select %p510, %s27, 1
        %s512 = smul.addr %s511, 2
        %s513 = scalar_lea.vmem %s7, %s512
        %p514 = scmp.lt.s32.totalorder %s27, 1
        %s515 = scalar_select %p514, %s27, 1
        %s516 = smul.addr %s515, 8
        %s517 = scalar_lea.vmem %s8, %s516
        %p518 = scmp.lt.s32.totalorder %s27, 1
        %s519 = scalar_select %p518, %s27, 1
        %s520 = smul.addr %s519, 2
        %s521 = smul.addr %s520, 8
        %s522 = scalar_lea.vmem %s9, %s521
        %v524 = vld [vmem:[%s498] sm:$0xf]
        %v525 = vld [vmem:[%s409] sm:$0xff]
        %v526 = vld [vmem:[%s409 + $0x8] sm:$0xff]
        %v527 = vld [vmem:[%s409 + $0x10] sm:$0xff]
        %v528 = vld [vmem:[%s409 + $0x18] sm:$0xff]
        %v529 = vld [vmem:[%s409 + $0x20] sm:$0xff]
        %v530 = vld [vmem:[%s409 + $0x28] sm:$0xff]
        %v531 = vld [vmem:[%s409 + $0x30] sm:$0xff]
        %v532 = vld [vmem:[%s409 + $0x38] sm:$0xff]
        %v533 = vld [vmem:[%s409 + $0x40] sm:$0xff]
        %v534 = vld [vmem:[%s409 + $0x48] sm:$0xff]
        %v535 = vld [vmem:[%s409 + $0x50] sm:$0xff]
        %v536 = vld [vmem:[%s409 + $0x58] sm:$0xff]
        %v537 = vld [vmem:[%s409 + $0x60] sm:$0xff]
        %v538 = vld [vmem:[%s409 + $0x68] sm:$0xff]
        %v539 = vld [vmem:[%s409 + $0x70] sm:$0xff]
        %v540 = vld [vmem:[%s409 + $0x78] sm:$0xff]
        %v541 = vld [vmem:[%s502] sm:$0x3]
        %v543 = vlaneseq
        %v544 = vshrl.u32 %v543, 7
        %v545 = vsub.s32 0, %v544
        %v546 = vrot.slane %v541, %v545
        %v547 = vlaneseq
        %v548 = vshrl.u32 %v547, 7
        %v549 = vsub.s32 1, %v548
        %v550 = vrot.slane %v541, %v549
        %v569 = vunpack.c.l.b16 %v525
        %v570 = vunpack.c.h.b16 %v525
        %v571 = vunpack.c.l.b16 %v526
        %v572 = vunpack.c.h.b16 %v526
        %v573 = vunpack.c.l.b16 %v527
        %v574 = vunpack.c.h.b16 %v527
        %v575 = vunpack.c.l.b16 %v528
        %v576 = vunpack.c.h.b16 %v528
        %v577 = vunpack.c.l.b16 %v529
        %v578 = vunpack.c.h.b16 %v529
        %v579 = vunpack.c.l.b16 %v530
        %v580 = vunpack.c.h.b16 %v530
        %v581 = vunpack.c.l.b16 %v531
        %v582 = vunpack.c.h.b16 %v531
        %v583 = vunpack.c.l.b16 %v532
        %v584 = vunpack.c.h.b16 %v532
        %v585 = vunpack.c.l.b16 %v533
        %v586 = vunpack.c.h.b16 %v533
        %v587 = vunpack.c.l.b16 %v534
        %v588 = vunpack.c.h.b16 %v534
        %v589 = vunpack.c.l.b16 %v535
        %v590 = vunpack.c.h.b16 %v535
        %v591 = vunpack.c.l.b16 %v536
        %v592 = vunpack.c.h.b16 %v536
        %v593 = vunpack.c.l.b16 %v537
        %v594 = vunpack.c.h.b16 %v537
        %v595 = vunpack.c.l.b16 %v538
        %v596 = vunpack.c.h.b16 %v538
        %v597 = vunpack.c.l.b16 %v539
        %v598 = vunpack.c.h.b16 %v539
        %v599 = vunpack.c.l.b16 %v540
        %v600 = vunpack.c.h.b16 %v540
        %v601 = vpack.c.b16 %v571, %v569
        %v602 = vpack.c.b16 %v572, %v570
        %v603 = vpack.c.b16 %v575, %v573
        %v604 = vpack.c.b16 %v576, %v574
        %v605 = vpack.c.b16 %v579, %v577
        %v606 = vpack.c.b16 %v580, %v578
        %v607 = vpack.c.b16 %v583, %v581
        %v608 = vpack.c.b16 %v584, %v582
        %v609 = vpack.c.b16 %v587, %v585
        %v610 = vpack.c.b16 %v588, %v586
        %v611 = vpack.c.b16 %v591, %v589
        %v612 = vpack.c.b16 %v592, %v590
        %v613 = vpack.c.b16 %v595, %v593
        %v614 = vpack.c.b16 %v596, %v594
        %v615 = vpack.c.b16 %v599, %v597
        %v616 = vpack.c.b16 %v600, %v598
        %633 = vmatprep.subr.bf16.mxu0 %v602
        %634 = vmatpush1.bf16.msra.mxu0 %v601
        %635 = vmatprep.subr.bf16.mxu0 %v604
        %636 = vmatpush1.bf16.msra.mxu0 %v603
        %637 = vmatprep.subr.bf16.mxu0 %v606
        %638 = vmatpush1.bf16.msra.mxu0 %v605
        %639 = vmatprep.subr.bf16.mxu0 %v608
        %640 = vmatpush1.bf16.msra.mxu0 %v607
        %641 = vmatprep.subr.bf16.mxu0 %v610
        %642 = vmatpush1.bf16.msra.mxu0 %v609
        %643 = vmatprep.subr.bf16.mxu0 %v612
        %644 = vmatpush1.bf16.msra.mxu0 %v611
        %645 = vmatprep.subr.bf16.mxu0 %v614
        %646 = vmatpush1.bf16.msra.mxu0 %v613
        %647 = vmatprep.subr.bf16.mxu0 %v616
        %648 = vmatpush1.bf16.msra.mxu0 %v615
        %649 = vmatprep.subr.bf16.mxu0 0
        %650 = vmatpush1.bf16.msra.mxu0 0
        %651 = vmatprep.subr.bf16.mxu0 0
        %652 = vmatpush1.bf16.msra.mxu0 0
        %653 = vmatprep.subr.bf16.mxu0 0
        %654 = vmatpush1.bf16.msra.mxu0 0
        %655 = vmatprep.subr.bf16.mxu0 0
        %656 = vmatpush1.bf16.msra.mxu0 0
        %657 = vmatprep.subr.bf16.mxu0 0
        %658 = vmatpush1.bf16.msra.mxu0 0
        %659 = vmatprep.subr.bf16.mxu0 0
        %660 = vmatpush1.bf16.msra.mxu0 0
        %661 = vmatprep.subr.bf16.mxu0 0
        %662 = vmatpush1.bf16.msra.mxu0 0
        %663 = vmatprep.subr.bf16.mxu0 0
        %664 = vmatpush1.bf16.msra.mxu0 0
        %665 = vmatprep.mubr.bf16.mxu0 0
        %666 = vmatmul.mubr.bf16.gmra.mrb[0].mxu0 %v524
        %v667 = vpop.f32.mrb[0].mxu0
        %v668 = vadd.f32 %v546, %v667
        %v669 = vpop.f32.mrb[0].mxu0
        %v670 = vadd.f32 %v550, %v669
        %v671 = vpop.f32.mrb[0].mxu0
        %v672 = vpop.f32.mrb[0].mxu0
        %673 = vdwg.mxu0
        %v674 = vld [vmem:[%s506] sm:$0x3]
        %v675 = vrot.slane %v668, 4
        %v676 = vadd.f32 %v668, %v675
        %v677 = vrot.slane %v676, 2
        %v678 = vadd.f32 %v676, %v677
        %v679 = vrot.slane %v678, 1
        %v680 = vadd.f32 %v678, %v679
        %v681 = vrcp.pop 8.0
        %v682 = vmul.f32 %v680, %v681
        %v683 = vsub.f32 %v668, %v682
        %v684 = vmul.f32 %v683, %v683
        %v685 = vrot.slane %v684, 4
        %v686 = vadd.f32 %v684, %v685
        %v687 = vrot.slane %v686, 2
        %v688 = vadd.f32 %v686, %v687
        %v689 = vrot.slane %v688, 1
        %v690 = vadd.f32 %v688, %v689
        %v691 = vmul.f32 %v690, %v681
        %v692 = vadd.f32 %v691, 1e-05
        %v693 = vrsqrt.pop %v692
        %v694 = vmul.f32 %v674, %v693
        %v695 = vlaneseq
        %v696 = vshrl.u32 %v695, 7
        %v697 = vsub.s32 0, %v696
        %v698 = vrot.slane %v694, %v697
        %v699 = vmul.f32 %v683, %v698
        %v700 = vlaneseq
        %v701 = vshrl.u32 %v700, 7
        %v702 = vsub.s32 1, %v701
        %v703 = vrot.slane %v674, %v702
        %v704 = vadd.f32 %v699, %v703
        %v705 = vmax.f32 %v704, 0.0
        %v706 = vpack.c.bf16 %v705, %v705
        %v707 = vld [vmem:[%s418] sm:$0xf]
        %v708 = vld [vmem:[%s418 + $0x4] sm:$0xf]
        %v709 = vld [vmem:[%s418 + $0x8] sm:$0xf]
        %v710 = vld [vmem:[%s418 + $0xc] sm:$0xf]
        %v711 = vld [vmem:[%s418 + $0x10] sm:$0xf]
        %v712 = vld [vmem:[%s418 + $0x14] sm:$0xf]
        %v713 = vld [vmem:[%s418 + $0x18] sm:$0xf]
        %v714 = vld [vmem:[%s418 + $0x1c] sm:$0xf]
        %v715 = vld [vmem:[%s418 + $0x20] sm:$0xf]
        %v716 = vld [vmem:[%s418 + $0x24] sm:$0xf]
        %v717 = vld [vmem:[%s418 + $0x28] sm:$0xf]
        %v718 = vld [vmem:[%s418 + $0x2c] sm:$0xf]
        %v719 = vld [vmem:[%s418 + $0x30] sm:$0xf]
        %v720 = vld [vmem:[%s418 + $0x34] sm:$0xf]
        %v721 = vld [vmem:[%s418 + $0x38] sm:$0xf]
        %v722 = vld [vmem:[%s418 + $0x3c] sm:$0xf]
        %v723 = vld [vmem:[%s509] sm:$0x1]
        %v725 = vlaneseq
        %v726 = vshrl.u32 %v725, 7
        %v727 = vsub.s32 0, %v726
        %v728 = vrot.slane %v723, %v727
        %v746 = vunpack.c.l.b16 %v707
        %v747 = vunpack.c.l.b16 %v708
        %v748 = vunpack.c.l.b16 %v709
        %v749 = vunpack.c.l.b16 %v710
        %v750 = vunpack.c.l.b16 %v711
        %v751 = vunpack.c.l.b16 %v712
        %v752 = vunpack.c.l.b16 %v713
        %v753 = vunpack.c.l.b16 %v714
        %v754 = vunpack.c.l.b16 %v715
        %v755 = vunpack.c.l.b16 %v716
        %v756 = vunpack.c.l.b16 %v717
        %v757 = vunpack.c.l.b16 %v718
        %v758 = vunpack.c.l.b16 %v719
        %v759 = vunpack.c.l.b16 %v720
        %v760 = vunpack.c.l.b16 %v721
        %v761 = vunpack.c.l.b16 %v722
        %v762 = vpack.c.b16 %v747, %v746
        %v763 = vpack.c.b16 %v749, %v748
        %v764 = vpack.c.b16 %v751, %v750
        %v765 = vpack.c.b16 %v753, %v752
        %v766 = vpack.c.b16 %v755, %v754
        %v767 = vpack.c.b16 %v757, %v756
        %v768 = vpack.c.b16 %v759, %v758
        %v769 = vpack.c.b16 %v761, %v760
        %778 = vmatprep.subr.bf16.mxu0 0
        %779 = vmatpush1.bf16.msra.mxu0 %v762
        %780 = vmatprep.subr.bf16.mxu0 0
        %781 = vmatpush1.bf16.msra.mxu0 %v763
        %782 = vmatprep.subr.bf16.mxu0 0
        %783 = vmatpush1.bf16.msra.mxu0 %v764
        %784 = vmatprep.subr.bf16.mxu0 0
        %785 = vmatpush1.bf16.msra.mxu0 %v765
        %786 = vmatprep.subr.bf16.mxu0 0
        %787 = vmatpush1.bf16.msra.mxu0 %v766
        %788 = vmatprep.subr.bf16.mxu0 0
        %789 = vmatpush1.bf16.msra.mxu0 %v767
        %790 = vmatprep.subr.bf16.mxu0 0
        %791 = vmatpush1.bf16.msra.mxu0 %v768
        %792 = vmatprep.subr.bf16.mxu0 0
        %793 = vmatpush1.bf16.msra.mxu0 %v769
        %794 = vmatprep.subr.bf16.mxu0 0
        %795 = vmatpush1.bf16.msra.mxu0 0
        %796 = vmatprep.subr.bf16.mxu0 0
        %797 = vmatpush1.bf16.msra.mxu0 0
        %798 = vmatprep.subr.bf16.mxu0 0
        %799 = vmatpush1.bf16.msra.mxu0 0
        %800 = vmatprep.subr.bf16.mxu0 0
        %801 = vmatpush1.bf16.msra.mxu0 0
        %802 = vmatprep.subr.bf16.mxu0 0
        %803 = vmatpush1.bf16.msra.mxu0 0
        %804 = vmatprep.subr.bf16.mxu0 0
        %805 = vmatpush1.bf16.msra.mxu0 0
        %806 = vmatprep.subr.bf16.mxu0 0
        %807 = vmatpush1.bf16.msra.mxu0 0
        %808 = vmatprep.subr.bf16.mxu0 0
        %809 = vmatpush1.bf16.msra.mxu0 0
        %810 = vmatprep.mubr.bf16.mxu0 0
        %811 = vmatmul.mubr.bf16.gmra.mrb[0].mxu0 %v706
        %v812 = vpop.f32.mrb[0].mxu0
        %v813 = vadd.f32 %v728, %v812
        %v814 = vpop.f32.mrb[0].mxu0
        %v815 = vpop.f32.mrb[0].mxu0
        %v816 = vpop.f32.mrb[0].mxu0
        %817 = vdwg.mxu0
        %818 = vmax.xlane.f32.xlu0 %v813
        %v819 = vpop.xlane.xlu0 %818
        %v820 = vsub.f32 %v813, %v819
        %v821 = vmul.f32 %v820, 1.442695
        %v822 = vpow.pop %v821
        %823 = vadd.xlane.f32.xlu0 %v822
        %v824 = vpop.xlane.xlu0 %823
        %v825 = vrcp.pop %v824
        %v826 = vmul.f32 %v822, %v825
        %827 = vst [vmem:[%s517] sm:$0xff] %v826
        %v828 = vmax.f32 %v670, 0.0
        %v829 = vpack.c.bf16 %v828, %v828
        %v830 = vld [vmem:[%s427] sm:$0xff]
        %v831 = vld [vmem:[%s427 + $0x8] sm:$0xff]
        %v832 = vld [vmem:[%s427 + $0x10] sm:$0xff]
        %v833 = vld [vmem:[%s427 + $0x18] sm:$0xff]
        %v834 = vld [vmem:[%s427 + $0x20] sm:$0xff]
        %v835 = vld [vmem:[%s427 + $0x28] sm:$0xff]
        %v836 = vld [vmem:[%s427 + $0x30] sm:$0xff]
        %v837 = vld [vmem:[%s427 + $0x38] sm:$0xff]
        %v838 = vld [vmem:[%s427 + $0x40] sm:$0xff]
        %v839 = vld [vmem:[%s427 + $0x48] sm:$0xff]
        %v840 = vld [vmem:[%s427 + $0x50] sm:$0xff]
        %v841 = vld [vmem:[%s427 + $0x58] sm:$0xff]
        %v842 = vld [vmem:[%s427 + $0x60] sm:$0xff]
        %v843 = vld [vmem:[%s427 + $0x68] sm:$0xff]
        %v844 = vld [vmem:[%s427 + $0x70] sm:$0xff]
        %v845 = vld [vmem:[%s427 + $0x78] sm:$0xff]
        %v846 = vld [vmem:[%s513] sm:$0x3]
        %v848 = vlaneseq
        %v849 = vshrl.u32 %v848, 7
        %v850 = vsub.s32 0, %v849
        %v851 = vrot.slane %v846, %v850
        %v852 = vlaneseq
        %v853 = vshrl.u32 %v852, 7
        %v854 = vsub.s32 1, %v853
        %v855 = vrot.slane %v846, %v854
        %v874 = vunpack.c.l.b16 %v830
        %v875 = vunpack.c.h.b16 %v830
        %v876 = vunpack.c.l.b16 %v831
        %v877 = vunpack.c.h.b16 %v831
        %v878 = vunpack.c.l.b16 %v832
        %v879 = vunpack.c.h.b16 %v832
        %v880 = vunpack.c.l.b16 %v833
        %v881 = vunpack.c.h.b16 %v833
        %v882 = vunpack.c.l.b16 %v834
        %v883 = vunpack.c.h.b16 %v834
        %v884 = vunpack.c.l.b16 %v835
        %v885 = vunpack.c.h.b16 %v835
        %v886 = vunpack.c.l.b16 %v836
        %v887 = vunpack.c.h.b16 %v836
        %v888 = vunpack.c.l.b16 %v837
        %v889 = vunpack.c.h.b16 %v837
        %v890 = vunpack.c.l.b16 %v838
        %v891 = vunpack.c.h.b16 %v838
        %v892 = vunpack.c.l.b16 %v839
        %v893 = vunpack.c.h.b16 %v839
        %v894 = vunpack.c.l.b16 %v840
        %v895 = vunpack.c.h.b16 %v840
        %v896 = vunpack.c.l.b16 %v841
        %v897 = vunpack.c.h.b16 %v841
        %v898 = vunpack.c.l.b16 %v842
        %v899 = vunpack.c.h.b16 %v842
        %v900 = vunpack.c.l.b16 %v843
        %v901 = vunpack.c.h.b16 %v843
        %v902 = vunpack.c.l.b16 %v844
        %v903 = vunpack.c.h.b16 %v844
        %v904 = vunpack.c.l.b16 %v845
        %v905 = vunpack.c.h.b16 %v845
        %v906 = vpack.c.b16 %v876, %v874
        %v907 = vpack.c.b16 %v877, %v875
        %v908 = vpack.c.b16 %v880, %v878
        %v909 = vpack.c.b16 %v881, %v879
        %v910 = vpack.c.b16 %v884, %v882
        %v911 = vpack.c.b16 %v885, %v883
        %v912 = vpack.c.b16 %v888, %v886
        %v913 = vpack.c.b16 %v889, %v887
        %v914 = vpack.c.b16 %v892, %v890
        %v915 = vpack.c.b16 %v893, %v891
        %v916 = vpack.c.b16 %v896, %v894
        %v917 = vpack.c.b16 %v897, %v895
        %v918 = vpack.c.b16 %v900, %v898
        %v919 = vpack.c.b16 %v901, %v899
        %v920 = vpack.c.b16 %v904, %v902
        %v921 = vpack.c.b16 %v905, %v903
        %938 = vmatprep.subr.bf16.mxu0 %v907
        %939 = vmatpush1.bf16.msra.mxu0 %v906
        %940 = vmatprep.subr.bf16.mxu0 %v909
        %941 = vmatpush1.bf16.msra.mxu0 %v908
        %942 = vmatprep.subr.bf16.mxu0 %v911
        %943 = vmatpush1.bf16.msra.mxu0 %v910
        %944 = vmatprep.subr.bf16.mxu0 %v913
        %945 = vmatpush1.bf16.msra.mxu0 %v912
        %946 = vmatprep.subr.bf16.mxu0 %v915
        %947 = vmatpush1.bf16.msra.mxu0 %v914
        %948 = vmatprep.subr.bf16.mxu0 %v917
        %949 = vmatpush1.bf16.msra.mxu0 %v916
        %950 = vmatprep.subr.bf16.mxu0 %v919
        %951 = vmatpush1.bf16.msra.mxu0 %v918
        %952 = vmatprep.subr.bf16.mxu0 %v921
        %953 = vmatpush1.bf16.msra.mxu0 %v920
        %954 = vmatprep.subr.bf16.mxu0 0
        %955 = vmatpush1.bf16.msra.mxu0 0
        %956 = vmatprep.subr.bf16.mxu0 0
        %957 = vmatpush1.bf16.msra.mxu0 0
        %958 = vmatprep.subr.bf16.mxu0 0
        %959 = vmatpush1.bf16.msra.mxu0 0
        %960 = vmatprep.subr.bf16.mxu0 0
        %961 = vmatpush1.bf16.msra.mxu0 0
        %962 = vmatprep.subr.bf16.mxu0 0
        %963 = vmatpush1.bf16.msra.mxu0 0
        %964 = vmatprep.subr.bf16.mxu0 0
        %965 = vmatpush1.bf16.msra.mxu0 0
        %966 = vmatprep.subr.bf16.mxu0 0
        %967 = vmatpush1.bf16.msra.mxu0 0
        %968 = vmatprep.subr.bf16.mxu0 0
        %969 = vmatpush1.bf16.msra.mxu0 0
        %970 = vmatprep.mubr.bf16.mxu0 0
        %971 = vmatmul.mubr.bf16.gmra.mrb[0].mxu0 %v829
        %v972 = vpop.f32.mrb[0].mxu0
        %v973 = vadd.f32 %v851, %v972
        %v974 = vpop.f32.mrb[0].mxu0
        %v975 = vadd.f32 %v855, %v974
        %v976 = vpop.f32.mrb[0].mxu0
        %v977 = vpop.f32.mrb[0].mxu0
        %978 = vdwg.mxu0
        %979 = vst [vmem:[%s522] sm:$0xff] %v973
        %980 = vst [vmem:[%s522 + $0x8] sm:$0xff] %v975
        %p981 = scmp.lt.s32.totalorder %s27, 1
        %s982 = scalar_select %p981, %s27, 1
        %s983 = smul.addr %s982, 8
        %s984 = scalar_lea.vmem %s8, %s983
        %p985 = scmp.lt.s32.totalorder %s27, 1
        %s986 = scalar_select %p985, %s27, 1
        %s987 = smul.addr %s986, 2
        %s988 = smul.addr %s987, 8
        %s989 = scalar_lea.vmem %s9, %s988
        // Predicated region
        $region65: #{network_forward.1} parent=51 // pred_check
          %p990 = pneg %p253
        $region66: #{network_forward.1} parent=51 // pred_check_branch
          %992 = sbr.rel (%p990) target = $region68
        $region67: #{network_forward.1} parent=51 // pred_region
          _
        $region68: #{network_forward.1} parent=51 // pred_fallthru
          _
        // Predicated region
        $region69: #{network_forward.1} parent=51 // pred_check
          %p993 = pneg %p279
        $region70: #{network_forward.1} parent=51 // pred_check_branch
          %995 = sbr.rel (%p993) target = $region72
        $region71: #{network_forward.1} parent=51 // pred_region
          _
        $region72: #{network_forward.1} parent=51 // pred_fallthru
          _
      $region52: #{network_forward.1} parent=5 // pred_fallthru
        _
      %p996 = scmp.le.s32.totalorder 2, %s22
      // Predicated region
      $region73: #{network_forward.1} parent=5 // pred_check
        %p997 = pneg %p996
      $region74: #{network_forward.1} parent=5 // pred_check_branch
        %999 = sbr.rel (%p997) target = $region76
      $region75: #{network_forward.1} parent=5 // pred_region
        %s1000 = ssub.s32 %s22, 2
        // Predicated region
        $region77: #{network_forward.1} parent=75 // pred_check
          %p1001 = pneg %p259
        $region78: #{network_forward.1} parent=75 // pred_check_branch
          %1003 = sbr.rel (%p1001) target = $region80
        $region79: #{network_forward.1} parent=75 // pred_region
          %p1004 = scmp.lt.s32.totalorder %s28, 1
          %s1005 = scalar_select %p1004, %s28, 1
          %s1006 = smul.addr %s1005, 8
          %s1007 = scalar_lea.vmem %s8, %s1006
        $region80: #{network_forward.1} parent=75 // pred_fallthru
          _
        // Predicated region
        $region81: #{network_forward.1} parent=75 // pred_check
          %p1008 = pneg %p285
        $region82: #{network_forward.1} parent=75 // pred_check_branch
          %1010 = sbr.rel (%p1008) target = $region84
        $region83: #{network_forward.1} parent=75 // pred_region
          %p1011 = scmp.lt.s32.totalorder %s28, 1
          %s1012 = scalar_select %p1011, %s28, 1
          %s1013 = smul.addr %s1012, 2
          %s1014 = smul.addr %s1013, 8
          %s1015 = scalar_lea.vmem %s9, %s1014
        $region84: #{network_forward.1} parent=75 // pred_fallthru
          _
      $region76: #{network_forward.1} parent=5 // pred_fallthru
        _
    $region6: #{network_forward.1} parent=1 // loop_footer
      %s26 = sadd.s32 1, %s22
    $region7: #{network_forward.1} parent=1 // loop_footer_branch
      %21 = sbr.rel target = $region3
    $region8: #{network_forward.1} parent=1 // loop_exit
      _
    %1016 = vsyncpa [#allocation3], 1
    %s1017 = scalar_lea.sflag [#allocation3], 1
    %1018 = vsyncpa %s1017, 1
    %1019 = vsyncpa [#allocation5], 1
    %s1020 = scalar_lea.sflag [#allocation5], 1
    %1021 = vsyncpa %s1020, 1

</llo_original>
